<compile_context>
chip_gen: v5e
topology: v5e:2x2
jax: 0.10.0
libtpu: 0.0.40
codegen_flags: <defaults>
</compile_context>

<pallas_src>
import math

import jax
import jax.numpy as jnp
from jax import lax
from jax.experimental import pallas as pl
from jax.experimental.pallas import tpu as pltpu


# ----------------------------------------------------------------------------
# Pallas LSTM recurrence kernel: one grid step == one (batch tile, time chunk).
# ----------------------------------------------------------------------------
def _lstm_recurrence_kernel(xg_ref, whh_ref, out_ref, h_ref, c_ref):
    """
    xg_ref  : (Tc, Bt, 4H) f32   pre-gates  x @ W_ih^T + b  for the chunk
    whh_ref : (H, 4H)      bf16  W_hh^T (resident across chunks)
    out_ref : (Tc, Bt, H)  f32   hidden-state outputs for the chunk
    h_ref   : (Bt, H)      f32   carried hidden state (scratch, persists)
    c_ref   : (Bt, H)      f32   carried cell state   (scratch, persists)
    """
    chunk = pl.program_id(1)          # time axis is innermost -> resets per tile

    @pl.when(chunk == 0)
    def _():
        h_ref[...] = jnp.zeros_like(h_ref)
        c_ref[...] = jnp.zeros_like(c_ref)

    Tc = xg_ref.shape[0]
    Bt, H = h_ref.shape

    whh = whh_ref[...]                # (H, 4H) bf16, stays resident

    # Per-lane scale so sigmoid(i, f, o) and tanh(g) collapse into a SINGLE
    # full-vreg tanh pass per step:  sigmoid(x) = 0.5 * tanh(0.5 * x) + 0.5.
    lane = lax.broadcasted_iota(jnp.int32, (Bt, 4 * H), 1)
    is_g = (lane >= 2 * H) & (lane < 3 * H)
    gate_scale = jnp.where(is_g, 1.0, 0.5).astype(jnp.float32)   # hoisted

    def step(t, carry):
        h, c = carry
        gates = xg_ref[t] + jnp.dot(
            h.astype(jnp.bfloat16), whh, preferred_element_type=jnp.float32)
        tah = jnp.tanh(gates * gate_scale)          # one full-(B,4H) EUP pass
        i_g = 0.5 * tah[:, 0:H] + 0.5
        f_g = 0.5 * tah[:, H:2 * H] + 0.5
        g_g = tah[:, 2 * H:3 * H]
        o_g = 0.5 * tah[:, 3 * H:4 * H] + 0.5
        c_new = f_g * c + i_g * g_g
        h_new = o_g * jnp.tanh(c_new)
        out_ref[t] = h_new
        return h_new, c_new

    h_fin, c_fin = lax.fori_loop(0, Tc, step, (h_ref[...], c_ref[...]),
                                 unroll=min(8, Tc))
    h_ref[...] = h_fin
    c_ref[...] = c_fin


def lstm_pallas(x, params, *, vmem_budget_bytes=12 * 1024 * 1024,
                t_chunk_cap=512, b_tile=None):
    """Run a full LSTM over x: (T, B, I) -> (T, B, H). Zero initial state."""
    T, B, I = x.shape
    H = params["whh_t"].shape[0]

    # ---- Hoisted input projection (no sequential dependence): plain XLA ----
    xg = (x.reshape(T * B, I) @ params["wih_t"]
          + params["b"]).reshape(T, B, 4 * H).astype(jnp.float32)

    # ---- Pad batch (sublane dim) to a multiple of 8 / of the batch tile ----
    if b_tile is None:
        B_pad = -(-B // 8) * 8
        Bt = B_pad                    # single batch tile (grid axis size 1)
    else:
        Bt = -(-max(8, b_tile) // 8) * 8
        B_pad = -(-B // Bt) * Bt
    if B_pad != B:
        xg = jnp.concatenate(
            [xg, jnp.zeros((T, B_pad - B, 4 * H), xg.dtype)], axis=1)

    # ---- Size the time chunk against a generation-safe VMEM budget ---------
    # double-buffered xg block + double-buffered out block (H lane-padded).
    h_lanes = -(-H // 128) * 128
    bytes_per_t = 2 * 4 * B_pad * (4 * H) + 2 * 4 * B_pad * h_lanes
    Tc = int(max(1, min(t_chunk_cap, vmem_budget_bytes // bytes_per_t, T)))
    T_pad = -(-T // Tc) * Tc
    if T_pad != T:
        # Extra steps run on zero pre-gates and are discarded (outputs only).
        xg = jnp.concatenate(
            [xg, jnp.zeros((T_pad - T, B_pad, 4 * H), xg.dtype)], axis=0)

    whh_bf16 = params["whh_t"].astype(jnp.bfloat16)

    out = pl.pallas_call(
        _lstm_recurrence_kernel,
        out_shape=jax.ShapeDtypeStruct((T_pad, B_pad, H), jnp.float32),
        grid_spec=pltpu.PrefetchScalarGridSpec(
            num_scalar_prefetch=0,
            grid=(B_pad // Bt, T_pad // Tc),
            in_specs=[
                pl.BlockSpec((Tc, Bt, 4 * H), lambda bt, c: (c, bt, 0)),  # xg
                pl.BlockSpec((H, 4 * H), lambda bt, c: (0, 0)),           # W_hh^T
            ],
            out_specs=pl.BlockSpec((Tc, Bt, H), lambda bt, c: (c, bt, 0)),
            scratch_shapes=[
                pltpu.VMEM((Bt, H), jnp.float32),   # h state
                pltpu.VMEM((Bt, H), jnp.float32),   # c state
            ],
        ),
        compiler_params=pltpu.CompilerParams(
            # batch tiles independent (shards across TCs on v7x); time serial.
            dimension_semantics=("parallel", "arbitrary"),
            vmem_limit_bytes=32 * 1024 * 1024,
        ),
    )(xg, whh_bf16)

    return out[:T, :B]


# ----------------------------------------------------------------------------
# Pure-JAX reference LSTM (for correctness check of the kernel).
# ----------------------------------------------------------------------------
def lstm_ref(x, params):
    T, B, I = x.shape
    H = params["whh_t"].shape[0]

    def step(carry, xt):
        h, c = carry
        gates = xt @ params["wih_t"] + h @ params["whh_t"] + params["b"]
        i_g = jax.nn.sigmoid(gates[:, 0:H])
        f_g = jax.nn.sigmoid(gates[:, H:2 * H])
        g_g = jnp.tanh(gates[:, 2 * H:3 * H])
        o_g = jax.nn.sigmoid(gates[:, 3 * H:4 * H])
        c = f_g * c + i_g * g_g
        h = o_g * jnp.tanh(c)
        return (h, c), h

    init = (jnp.zeros((B, H), jnp.float32), jnp.zeros((B, H), jnp.float32))
    _, hs = lax.scan(step, init, x)
    return hs


# ----------------------------------------------------------------------------
# DRNN glue: dilation padding / interleaving (mirrors the PyTorch DRNN exactly)
# ----------------------------------------------------------------------------
def drnn_layer(x, params, dilation, lstm_fn):
    """One dilated-RNN layer. x: (T, B, I) -> (T, B, H)."""
    T, B, I = x.shape
    dilated_steps = -(-T // dilation)                      # ceil
    pad = dilated_steps * dilation - T
    if pad > 0:                                            # _pad_inputs
        x = jnp.concatenate([x, jnp.zeros((pad, B, I), x.dtype)], axis=0)
    # _prepare_inputs: cat([inputs[j::rate] for j], dim=1) == this reshape.
    dilated = x.reshape(dilated_steps, dilation * B, I)
    hs = lstm_fn(dilated, params)                          # (dilated_steps, rate*B, H)
    H = hs.shape[-1]
    # _split_outputs + _unpad_outputs (also a pure reshape).
    out = hs.reshape(dilated_steps * dilation, B, H)
    return out[:T]


def residual_drnn_forward(input_data, stack_params, dilations, lstm_fn):
    """ResidualDRNN.forward semantics."""
    out = input_data
    for layer_num, group in enumerate(dilations):
        residual = input_data
        x = input_data
        for li, d in enumerate(group):                     # DRNN group
            x = drnn_layer(x, stack_params[layer_num][li], d, lstm_fn)
        out = x
        if layer_num > 0:
            out = out + residual
        input_data = out
    return out


# ----------------------------------------------------------------------------
# Deterministic parameter init (PyTorch nn.LSTM default: U(-1/sqrt(H), 1/sqrt(H)))
# ----------------------------------------------------------------------------
def init_lstm_params(key, input_size, hidden_size):
    k = 1.0 / math.sqrt(hidden_size)
    k1, k2, k3, k4 = jax.random.split(key, 4)
    w_ih = jax.random.uniform(k1, (4 * hidden_size, input_size), jnp.float32, -k, k)
    w_hh = jax.random.uniform(k2, (4 * hidden_size, hidden_size), jnp.float32, -k, k)
    b_ih = jax.random.uniform(k3, (4 * hidden_size,), jnp.float32, -k, k)
    b_hh = jax.random.uniform(k4, (4 * hidden_size,), jnp.float32, -k, k)
    return {
        "wih_t": w_ih.T,                                   # (I, 4H)
        "whh_t": w_hh.T,                                   # (H, 4H)
        "b": (b_ih + b_hh).reshape(1, 4 * hidden_size),    # (1, 4H)
    }


if __name__ == "__main__":
    # args: INPUT_SIZE, STATE_H_SIZE, DILATIONS, RNN_CELL_TYPE='LSTM'
    INPUT_SIZE = 8
    STATE_H_SIZE = 32
    DILATIONS = ((1, 2), (2, 6))
    T, B = 8, 4

    root = jax.random.PRNGKey(0)
    data_key, param_key = jax.random.split(root)

    # Build the rnn_stack parameters.
    stack_params = []
    for grp_num, group in enumerate(DILATIONS):
        in_size = INPUT_SIZE if grp_num == 0 else STATE_H_SIZE
        group_params = []
        for li, _d in enumerate(group):
            param_key, sub = jax.random.split(param_key)
            cell_in = in_size if li == 0 else STATE_H_SIZE
            group_params.append(init_lstm_params(sub, cell_in, STATE_H_SIZE))
        stack_params.append(group_params)

    # layout: (T, B, F) seq-major, matching DRNN batch_first=False.
    input_data = jax.random.normal(data_key, (T, B, INPUT_SIZE), dtype=jnp.float32)

    out_pallas = residual_drnn_forward(input_data, stack_params, DILATIONS, lstm_pallas)
    out_pallas = jax.block_until_ready(out_pallas)

    out_ref = residual_drnn_forward(input_data, stack_params, DILATIONS, lstm_ref)
    out_ref = jax.block_until_ready(out_ref)

    assert out_pallas.shape == (T, B, STATE_H_SIZE)
    # bf16 recurrent-matmul operands (f32 accumulation/state) vs pure-f32 ref.
    assert jnp.allclose(out_pallas, out_ref, rtol=5e-2, atol=5e-2), (
        float(jnp.max(jnp.abs(out_pallas - out_ref))))

    print("KERNEL_OK")
</pallas_src>

<mosaic_0001>
module attributes {stable_mosaic.version = 11 : i64} {
  func.func @_lstm_recurrence_kernel(%arg0: i32, %arg1: i32, %arg2: memref<8x8x128xf32, #tpu.memory_space<vmem>>, %arg3: memref<32x128xbf16, #tpu.memory_space<vmem>>, %arg4: memref<8x8x32xf32, #tpu.memory_space<vmem>>, %arg5: memref<8x32xf32, #tpu.memory_space<vmem>>, %arg6: memref<8x32xf32, #tpu.memory_space<vmem>>) attributes {dimension_semantics = [#tpu.dimension_semantics<parallel>, #tpu.dimension_semantics<arbitrary>], iteration_bounds = array<i64: 1, 1>, scalar_prefetch = 0 : i64, scratch_operands = 2 : i64, tpu.core_type = #tpu.core_type<tc>, window_params = [{transform_indices = @transform_0, window_bounds = array<i64: 8, 8, 128>}, {pipeline_mode = #tpu.pipeline_mode<synchronous>, transform_indices = @transform_1, window_bounds = array<i64: 32, 128>}, {transform_indices = @transform_2, window_bounds = array<i64: 8, 8, 32>}]} {
    %c0_i32 = arith.constant 0 : i32
    %0 = arith.cmpi eq, %arg1, %c0_i32 : i32
    %1 = arith.extui %0 : i1 to i32
    %c0_i32_0 = arith.constant 0 : i32
    %2 = arith.cmpi ne, %1, %c0_i32_0 : i32
    scf.if %2 {
      %cst_100 = arith.constant 0.000000e+00 : f32
      %281 = vector.broadcast %cst_100 : f32 to vector<8x32xf32>
      %c0_101 = arith.constant 0 : index
      %c0_102 = arith.constant 0 : index
      %282 = vector.load %arg5[%c0_101, %c0_102] : memref<8x32xf32, #tpu.memory_space<vmem>>, vector<8x32xf32>
      tpu.vector_store %arg5[%c0_101, %c0_102], %281 {strides = array<i32>} : memref<8x32xf32, #tpu.memory_space<vmem>>, vector<8x32xf32>,
      %cst_103 = arith.constant 0.000000e+00 : f32
      %283 = vector.broadcast %cst_103 : f32 to vector<8x32xf32>
      %c0_104 = arith.constant 0 : index
      %c0_105 = arith.constant 0 : index
      %284 = vector.load %arg6[%c0_104, %c0_105] : memref<8x32xf32, #tpu.memory_space<vmem>>, vector<8x32xf32>
      tpu.vector_store %arg6[%c0_104, %c0_105], %283 {strides = array<i32>} : memref<8x32xf32, #tpu.memory_space<vmem>>, vector<8x32xf32>,
    } else {
    }
    %c0 = arith.constant 0 : index
    %c0_1 = arith.constant 0 : index
    %3 = vector.load %arg3[%c0, %c0_1] : memref<32x128xbf16, #tpu.memory_space<vmem>>, vector<32x128xbf16>
    %4 = tpu.iota {dimensions = array<i32: 1>} : vector<8x128xi32>
    %c64_i32 = arith.constant 64 : i32
    %5 = vector.broadcast %c64_i32 : i32 to vector<8x128xi32>
    %6 = arith.cmpi sge, %4, %5 : vector<8x128xi32>
    %c96_i32 = arith.constant 96 : i32
    %7 = vector.broadcast %c96_i32 : i32 to vector<8x128xi32>
    %8 = arith.cmpi slt, %4, %7 : vector<8x128xi32>
    %9 = arith.andi %6, %8 : vector<8x128xi1>
    %cst = arith.constant 1.000000e+00 : f32
    %cst_2 = arith.constant 5.000000e-01 : f32
    %10 = vector.broadcast %cst : f32 to vector<8x128xf32>
    %11 = vector.broadcast %cst_2 : f32 to vector<8x128xf32>
    %12 = arith.select %9, %10, %11 : vector<8x128xi1>, vector<8x128xf32>
    %c0_3 = arith.constant 0 : index
    %c0_4 = arith.constant 0 : index
    %13 = vector.load %arg5[%c0_3, %c0_4] : memref<8x32xf32, #tpu.memory_space<vmem>>, vector<8x32xf32>
    %c0_5 = arith.constant 0 : index
    %c0_6 = arith.constant 0 : index
    %14 = vector.load %arg6[%c0_5, %c0_6] : memref<8x32xf32, #tpu.memory_space<vmem>>, vector<8x32xf32>
    %c0_i32_7 = arith.constant 0 : i32
    %15 = arith.index_cast %c0_i32_7 : i32 to index
    %c0_8 = arith.constant 0 : index
    %c0_9 = arith.constant 0 : index
    %16 = vector.load %arg2[%15, %c0_8, %c0_9] : memref<8x8x128xf32, #tpu.memory_space<vmem>>, vector<1x8x128xf32>
    %17 = vector.shape_cast %16 : vector<1x8x128xf32> to vector<8x128xf32>
    %18 = arith.truncf %13 : vector<8x32xf32> to vector<8x32xbf16>
    %cst_10 = arith.constant dense<0.000000e+00> : vector<8x128xf32>
    %19 = tpu.matmul %18, %3, %cst_10 {dimension_numbers = #tpu.dot_dimension_numbers<[1], [0], [0], [1], [0, 0, 1, 1], [], []>} : vector<8x32xbf16>, vector<32x128xbf16>, vector<8x128xf32> -> vector<8x128xf32>
    %20 = arith.addf %17, %19 : vector<8x128xf32>
    %21 = arith.mulf %20, %12 : vector<8x128xf32>
    %22 = math.tanh %21 : vector<8x128xf32>
    %23 = vector.extract_strided_slice %22 {offsets = [0, 0], sizes = [8, 32], strides = [1, 1]} : vector<8x128xf32> to vector<8x32xf32>
    %cst_11 = arith.constant 5.000000e-01 : f32
    %24 = vector.broadcast %cst_11 : f32 to vector<8x32xf32>
    %25 = arith.mulf %24, %23 : vector<8x32xf32>
    %cst_12 = arith.constant 5.000000e-01 : f32
    %26 = vector.broadcast %cst_12 : f32 to vector<8x32xf32>
    %27 = arith.addf %25, %26 : vector<8x32xf32>
    %28 = vector.extract_strided_slice %22 {offsets = [0, 32], sizes = [8, 32], strides = [1, 1]} : vector<8x128xf32> to vector<8x32xf32>
    %cst_13 = arith.constant 5.000000e-01 : f32
    %29 = vector.broadcast %cst_13 : f32 to vector<8x32xf32>
    %30 = arith.mulf %29, %28 : vector<8x32xf32>
    %cst_14 = arith.constant 5.000000e-01 : f32
    %31 = vector.broadcast %cst_14 : f32 to vector<8x32xf32>
    %32 = arith.addf %30, %31 : vector<8x32xf32>
    %33 = vector.extract_strided_slice %22 {offsets = [0, 64], sizes = [8, 32], strides = [1, 1]} : vector<8x128xf32> to vector<8x32xf32>
    %34 = vector.extract_strided_slice %22 {offsets = [0, 96], sizes = [8, 32], strides = [1, 1]} : vector<8x128xf32> to vector<8x32xf32>
    %cst_15 = arith.constant 5.000000e-01 : f32
    %35 = vector.broadcast %cst_15 : f32 to vector<8x32xf32>
    %36 = arith.mulf %35, %34 : vector<8x32xf32>
    %cst_16 = arith.constant 5.000000e-01 : f32
    %37 = vector.broadcast %cst_16 : f32 to vector<8x32xf32>
    %38 = arith.addf %36, %37 : vector<8x32xf32>
    %39 = arith.mulf %32, %14 : vector<8x32xf32>
    %40 = arith.mulf %27, %33 : vector<8x32xf32>
    %41 = arith.addf %39, %40 : vector<8x32xf32>
    %42 = math.tanh %41 : vector<8x32xf32>
    %43 = arith.mulf %38, %42 : vector<8x32xf32>
    %44 = arith.index_cast %c0_i32_7 : i32 to index
    %c0_17 = arith.constant 0 : index
    %c0_18 = arith.constant 0 : index
    %45 = vector.load %arg4[%44, %c0_17, %c0_18] : memref<8x8x32xf32, #tpu.memory_space<vmem>>, vector<1x8x32xf32>
    %46 = vector.shape_cast %45 : vector<1x8x32xf32> to vector<8x32xf32>
    %47 = vector.shape_cast %43 : vector<8x32xf32> to vector<1x8x32xf32>
    tpu.vector_store %arg4[%44, %c0_17, %c0_18], %47 {strides = array<i32>} : memref<8x8x32xf32, #tpu.memory_space<vmem>>, vector<1x8x32xf32>,
    %c1_i32 = arith.constant 1 : i32
    %48 = arith.index_cast %c1_i32 : i32 to index
    %c0_19 = arith.constant 0 : index
    %c0_20 = arith.constant 0 : index
    %49 = vector.load %arg2[%48, %c0_19, %c0_20] : memref<8x8x128xf32, #tpu.memory_space<vmem>>, vector<1x8x128xf32>
    %50 = vector.shape_cast %49 : vector<1x8x128xf32> to vector<8x128xf32>
    %51 = arith.truncf %43 : vector<8x32xf32> to vector<8x32xbf16>
    %cst_21 = arith.constant dense<0.000000e+00> : vector<8x128xf32>
    %52 = tpu.matmul %51, %3, %cst_21 {dimension_numbers = #tpu.dot_dimension_numbers<[1], [0], [0], [1], [0, 0, 1, 1], [], []>} : vector<8x32xbf16>, vector<32x128xbf16>, vector<8x128xf32> -> vector<8x128xf32>
    %53 = arith.addf %50, %52 : vector<8x128xf32>
    %54 = arith.mulf %53, %12 : vector<8x128xf32>
    %55 = math.tanh %54 : vector<8x128xf32>
    %56 = vector.extract_strided_slice %55 {offsets = [0, 0], sizes = [8, 32], strides = [1, 1]} : vector<8x128xf32> to vector<8x32xf32>
    %cst_22 = arith.constant 5.000000e-01 : f32
    %57 = vector.broadcast %cst_22 : f32 to vector<8x32xf32>
    %58 = arith.mulf %57, %56 : vector<8x32xf32>
    %cst_23 = arith.constant 5.000000e-01 : f32
    %59 = vector.broadcast %cst_23 : f32 to vector<8x32xf32>
    %60 = arith.addf %58, %59 : vector<8x32xf32>
    %61 = vector.extract_strided_slice %55 {offsets = [0, 32], sizes = [8, 32], strides = [1, 1]} : vector<8x128xf32> to vector<8x32xf32>
    %cst_24 = arith.constant 5.000000e-01 : f32
    %62 = vector.broadcast %cst_24 : f32 to vector<8x32xf32>
    %63 = arith.mulf %62, %61 : vector<8x32xf32>
    %cst_25 = arith.constant 5.000000e-01 : f32
    %64 = vector.broadcast %cst_25 : f32 to vector<8x32xf32>
    %65 = arith.addf %63, %64 : vector<8x32xf32>
    %66 = vector.extract_strided_slice %55 {offsets = [0, 64], sizes = [8, 32], strides = [1, 1]} : vector<8x128xf32> to vector<8x32xf32>
    %67 = vector.extract_strided_slice %55 {offsets = [0, 96], sizes = [8, 32], strides = [1, 1]} : vector<8x128xf32> to vector<8x32xf32>
    %cst_26 = arith.constant 5.000000e-01 : f32
    %68 = vector.broadcast %cst_26 : f32 to vector<8x32xf32>
    %69 = arith.mulf %68, %67 : vector<8x32xf32>
    %cst_27 = arith.constant 5.000000e-01 : f32
    %70 = vector.broadcast %cst_27 : f32 to vector<8x32xf32>
    %71 = arith.addf %69, %70 : vector<8x32xf32>
    %72 = arith.mulf %65, %41 : vector<8x32xf32>
    %73 = arith.mulf %60, %66 : vector<8x32xf32>
    %74 = arith.addf %72, %73 : vector<8x32xf32>
    %75 = math.tanh %74 : vector<8x32xf32>
    %76 = arith.mulf %71, %75 : vector<8x32xf32>
    %77 = arith.index_cast %c1_i32 : i32 to index
    %c0_28 = arith.constant 0 : index
    %c0_29 = arith.constant 0 : index
    %78 = vector.load %arg4[%77, %c0_28, %c0_29] : memref<8x8x32xf32, #tpu.memory_space<vmem>>, vector<1x8x32xf32>
    %79 = vector.shape_cast %78 : vector<1x8x32xf32> to vector<8x32xf32>
    %80 = vector.shape_cast %76 : vector<8x32xf32> to vector<1x8x32xf32>
    tpu.vector_store %arg4[%77, %c0_28, %c0_29], %80 {strides = array<i32>} : memref<8x8x32xf32, #tpu.memory_space<vmem>>, vector<1x8x32xf32>,
    %c2_i32 = arith.constant 2 : i32
    %81 = arith.index_cast %c2_i32 : i32 to index
    %c0_30 = arith.constant 0 : index
    %c0_31 = arith.constant 0 : index
    %82 = vector.load %arg2[%81, %c0_30, %c0_31] : memref<8x8x128xf32, #tpu.memory_space<vmem>>, vector<1x8x128xf32>
    %83 = vector.shape_cast %82 : vector<1x8x128xf32> to vector<8x128xf32>
    %84 = arith.truncf %76 : vector<8x32xf32> to vector<8x32xbf16>
    %cst_32 = arith.constant dense<0.000000e+00> : vector<8x128xf32>
    %85 = tpu.matmul %84, %3, %cst_32 {dimension_numbers = #tpu.dot_dimension_numbers<[1], [0], [0], [1], [0, 0, 1, 1], [], []>} : vector<8x32xbf16>, vector<32x128xbf16>, vector<8x128xf32> -> vector<8x128xf32>
    %86 = arith.addf %83, %85 : vector<8x128xf32>
    %87 = arith.mulf %86, %12 : vector<8x128xf32>
    %88 = math.tanh %87 : vector<8x128xf32>
    %89 = vector.extract_strided_slice %88 {offsets = [0, 0], sizes = [8, 32], strides = [1, 1]} : vector<8x128xf32> to vector<8x32xf32>
    %cst_33 = arith.constant 5.000000e-01 : f32
    %90 = vector.broadcast %cst_33 : f32 to vector<8x32xf32>
    %91 = arith.mulf %90, %89 : vector<8x32xf32>
    %cst_34 = arith.constant 5.000000e-01 : f32
    %92 = vector.broadcast %cst_34 : f32 to vector<8x32xf32>
    %93 = arith.addf %91, %92 : vector<8x32xf32>
    %94 = vector.extract_strided_slice %88 {offsets = [0, 32], sizes = [8, 32], strides = [1, 1]} : vector<8x128xf32> to vector<8x32xf32>
    %cst_35 = arith.constant 5.000000e-01 : f32
    %95 = vector.broadcast %cst_35 : f32 to vector<8x32xf32>
    %96 = arith.mulf %95, %94 : vector<8x32xf32>
    %cst_36 = arith.constant 5.000000e-01 : f32
    %97 = vector.broadcast %cst_36 : f32 to vector<8x32xf32>
    %98 = arith.addf %96, %97 : vector<8x32xf32>
    %99 = vector.extract_strided_slice %88 {offsets = [0, 64], sizes = [8, 32], strides = [1, 1]} : vector<8x128xf32> to vector<8x32xf32>
    %100 = vector.extract_strided_slice %88 {offsets = [0, 96], sizes = [8, 32], strides = [1, 1]} : vector<8x128xf32> to vector<8x32xf32>
    %cst_37 = arith.constant 5.000000e-01 : f32
    %101 = vector.broadcast %cst_37 : f32 to vector<8x32xf32>
    %102 = arith.mulf %101, %100 : vector<8x32xf32>
    %cst_38 = arith.constant 5.000000e-01 : f32
    %103 = vector.broadcast %cst_38 : f32 to vector<8x32xf32>
    %104 = arith.addf %102, %103 : vector<8x32xf32>
    %105 = arith.mulf %98, %74 : vector<8x32xf32>
    %106 = arith.mulf %93, %99 : vector<8x32xf32>
    %107 = arith.addf %105, %106 : vector<8x32xf32>
    %108 = math.tanh %107 : vector<8x32xf32>
    %109 = arith.mulf %104, %108 : vector<8x32xf32>
    %110 = arith.index_cast %c2_i32 : i32 to index
    %c0_39 = arith.constant 0 : index
    %c0_40 = arith.constant 0 : index
    %111 = vector.load %arg4[%110, %c0_39, %c0_40] : memref<8x8x32xf32, #tpu.memory_space<vmem>>, vector<1x8x32xf32>
    %112 = vector.shape_cast %111 : vector<1x8x32xf32> to vector<8x32xf32>
    %113 = vector.shape_cast %109 : vector<8x32xf32> to vector<1x8x32xf32>
    tpu.vector_store %arg4[%110, %c0_39, %c0_40], %113 {strides = array<i32>} : memref<8x8x32xf32, #tpu.memory_space<vmem>>, vector<1x8x32xf32>,
    %c3_i32 = arith.constant 3 : i32
    %114 = arith.index_cast %c3_i32 : i32 to index
    %c0_41 = arith.constant 0 : index
    %c0_42 = arith.constant 0 : index
    %115 = vector.load %arg2[%114, %c0_41, %c0_42] : memref<8x8x128xf32, #tpu.memory_space<vmem>>, vector<1x8x128xf32>
    %116 = vector.shape_cast %115 : vector<1x8x128xf32> to vector<8x128xf32>
    %117 = arith.truncf %109 : vector<8x32xf32> to vector<8x32xbf16>
    %cst_43 = arith.constant dense<0.000000e+00> : vector<8x128xf32>
    %118 = tpu.matmul %117, %3, %cst_43 {dimension_numbers = #tpu.dot_dimension_numbers<[1], [0], [0], [1], [0, 0, 1, 1], [], []>} : vector<8x32xbf16>, vector<32x128xbf16>, vector<8x128xf32> -> vector<8x128xf32>
    %119 = arith.addf %116, %118 : vector<8x128xf32>
    %120 = arith.mulf %119, %12 : vector<8x128xf32>
    %121 = math.tanh %120 : vector<8x128xf32>
    %122 = vector.extract_strided_slice %121 {offsets = [0, 0], sizes = [8, 32], strides = [1, 1]} : vector<8x128xf32> to vector<8x32xf32>
    %cst_44 = arith.constant 5.000000e-01 : f32
    %123 = vector.broadcast %cst_44 : f32 to vector<8x32xf32>
    %124 = arith.mulf %123, %122 : vector<8x32xf32>
    %cst_45 = arith.constant 5.000000e-01 : f32
    %125 = vector.broadcast %cst_45 : f32 to vector<8x32xf32>
    %126 = arith.addf %124, %125 : vector<8x32xf32>
    %127 = vector.extract_strided_slice %121 {offsets = [0, 32], sizes = [8, 32], strides = [1, 1]} : vector<8x128xf32> to vector<8x32xf32>
    %cst_46 = arith.constant 5.000000e-01 : f32
    %128 = vector.broadcast %cst_46 : f32 to vector<8x32xf32>
    %129 = arith.mulf %128, %127 : vector<8x32xf32>
    %cst_47 = arith.constant 5.000000e-01 : f32
    %130 = vector.broadcast %cst_47 : f32 to vector<8x32xf32>
    %131 = arith.addf %129, %130 : vector<8x32xf32>
    %132 = vector.extract_strided_slice %121 {offsets = [0, 64], sizes = [8, 32], strides = [1, 1]} : vector<8x128xf32> to vector<8x32xf32>
    %133 = vector.extract_strided_slice %121 {offsets = [0, 96], sizes = [8, 32], strides = [1, 1]} : vector<8x128xf32> to vector<8x32xf32>
    %cst_48 = arith.constant 5.000000e-01 : f32
    %134 = vector.broadcast %cst_48 : f32 to vector<8x32xf32>
    %135 = arith.mulf %134, %133 : vector<8x32xf32>
    %cst_49 = arith.constant 5.000000e-01 : f32
    %136 = vector.broadcast %cst_49 : f32 to vector<8x32xf32>
    %137 = arith.addf %135, %136 : vector<8x32xf32>
    %138 = arith.mulf %131, %107 : vector<8x32xf32>
    %139 = arith.mulf %126, %132 : vector<8x32xf32>
    %140 = arith.addf %138, %139 : vector<8x32xf32>
    %141 = math.tanh %140 : vector<8x32xf32>
    %142 = arith.mulf %137, %141 : vector<8x32xf32>
    %143 = arith.index_cast %c3_i32 : i32 to index
    %c0_50 = arith.constant 0 : index
    %c0_51 = arith.constant 0 : index
    %144 = vector.load %arg4[%143, %c0_50, %c0_51] : memref<8x8x32xf32, #tpu.memory_space<vmem>>, vector<1x8x32xf32>
    %145 = vector.shape_cast %144 : vector<1x8x32xf32> to vector<8x32xf32>
    %146 = vector.shape_cast %142 : vector<8x32xf32> to vector<1x8x32xf32>
    tpu.vector_store %arg4[%143, %c0_50, %c0_51], %146 {strides = array<i32>} : memref<8x8x32xf32, #tpu.memory_space<vmem>>, vector<1x8x32xf32>,
    %c4_i32 = arith.constant 4 : i32
    %147 = arith.index_cast %c4_i32 : i32 to index
    %c0_52 = arith.constant 0 : index
    %c0_53 = arith.constant 0 : index
    %148 = vector.load %arg2[%147, %c0_52, %c0_53] : memref<8x8x128xf32, #tpu.memory_space<vmem>>, vector<1x8x128xf32>
    %149 = vector.shape_cast %148 : vector<1x8x128xf32> to vector<8x128xf32>
    %150 = arith.truncf %142 : vector<8x32xf32> to vector<8x32xbf16>
    %cst_54 = arith.constant dense<0.000000e+00> : vector<8x128xf32>
    %151 = tpu.matmul %150, %3, %cst_54 {dimension_numbers = #tpu.dot_dimension_numbers<[1], [0], [0], [1], [0, 0, 1, 1], [], []>} : vector<8x32xbf16>, vector<32x128xbf16>, vector<8x128xf32> -> vector<8x128xf32>
    %152 = arith.addf %149, %151 : vector<8x128xf32>
    %153 = arith.mulf %152, %12 : vector<8x128xf32>
    %154 = math.tanh %153 : vector<8x128xf32>
    %155 = vector.extract_strided_slice %154 {offsets = [0, 0], sizes = [8, 32], strides = [1, 1]} : vector<8x128xf32> to vector<8x32xf32>
    %cst_55 = arith.constant 5.000000e-01 : f32
    %156 = vector.broadcast %cst_55 : f32 to vector<8x32xf32>
    %157 = arith.mulf %156, %155 : vector<8x32xf32>
    %cst_56 = arith.constant 5.000000e-01 : f32
    %158 = vector.broadcast %cst_56 : f32 to vector<8x32xf32>
    %159 = arith.addf %157, %158 : vector<8x32xf32>
    %160 = vector.extract_strided_slice %154 {offsets = [0, 32], sizes = [8, 32], strides = [1, 1]} : vector<8x128xf32> to vector<8x32xf32>
    %cst_57 = arith.constant 5.000000e-01 : f32
    %161 = vector.broadcast %cst_57 : f32 to vector<8x32xf32>
    %162 = arith.mulf %161, %160 : vector<8x32xf32>
    %cst_58 = arith.constant 5.000000e-01 : f32
    %163 = vector.broadcast %cst_58 : f32 to vector<8x32xf32>
    %164 = arith.addf %162, %163 : vector<8x32xf32>
    %165 = vector.extract_strided_slice %154 {offsets = [0, 64], sizes = [8, 32], strides = [1, 1]} : vector<8x128xf32> to vector<8x32xf32>
    %166 = vector.extract_strided_slice %154 {offsets = [0, 96], sizes = [8, 32], strides = [1, 1]} : vector<8x128xf32> to vector<8x32xf32>
    %cst_59 = arith.constant 5.000000e-01 : f32
    %167 = vector.broadcast %cst_59 : f32 to vector<8x32xf32>
    %168 = arith.mulf %167, %166 : vector<8x32xf32>
    %cst_60 = arith.constant 5.000000e-01 : f32
    %169 = vector.broadcast %cst_60 : f32 to vector<8x32xf32>
    %170 = arith.addf %168, %169 : vector<8x32xf32>
    %171 = arith.mulf %164, %140 : vector<8x32xf32>
    %172 = arith.mulf %159, %165 : vector<8x32xf32>
    %173 = arith.addf %171, %172 : vector<8x32xf32>
    %174 = math.tanh %173 : vector<8x32xf32>
    %175 = arith.mulf %170, %174 : vector<8x32xf32>
    %176 = arith.index_cast %c4_i32 : i32 to index
    %c0_61 = arith.constant 0 : index
    %c0_62 = arith.constant 0 : index
    %177 = vector.load %arg4[%176, %c0_61, %c0_62] : memref<8x8x32xf32, #tpu.memory_space<vmem>>, vector<1x8x32xf32>
    %178 = vector.shape_cast %177 : vector<1x8x32xf32> to vector<8x32xf32>
    %179 = vector.shape_cast %175 : vector<8x32xf32> to vector<1x8x32xf32>
    tpu.vector_store %arg4[%176, %c0_61, %c0_62], %179 {strides = array<i32>} : memref<8x8x32xf32, #tpu.memory_space<vmem>>, vector<1x8x32xf32>,
    %c5_i32 = arith.constant 5 : i32
    %180 = arith.index_cast %c5_i32 : i32 to index
    %c0_63 = arith.constant 0 : index
    %c0_64 = arith.constant 0 : index
    %181 = vector.load %arg2[%180, %c0_63, %c0_64] : memref<8x8x128xf32, #tpu.memory_space<vmem>>, vector<1x8x128xf32>
    %182 = vector.shape_cast %181 : vector<1x8x128xf32> to vector<8x128xf32>
    %183 = arith.truncf %175 : vector<8x32xf32> to vector<8x32xbf16>
    %cst_65 = arith.constant dense<0.000000e+00> : vector<8x128xf32>
    %184 = tpu.matmul %183, %3, %cst_65 {dimension_numbers = #tpu.dot_dimension_numbers<[1], [0], [0], [1], [0, 0, 1, 1], [], []>} : vector<8x32xbf16>, vector<32x128xbf16>, vector<8x128xf32> -> vector<8x128xf32>
    %185 = arith.addf %182, %184 : vector<8x128xf32>
    %186 = arith.mulf %185, %12 : vector<8x128xf32>
    %187 = math.tanh %186 : vector<8x128xf32>
    %188 = vector.extract_strided_slice %187 {offsets = [0, 0], sizes = [8, 32], strides = [1, 1]} : vector<8x128xf32> to vector<8x32xf32>
    %cst_66 = arith.constant 5.000000e-01 : f32
    %189 = vector.broadcast %cst_66 : f32 to vector<8x32xf32>
    %190 = arith.mulf %189, %188 : vector<8x32xf32>
    %cst_67 = arith.constant 5.000000e-01 : f32
    %191 = vector.broadcast %cst_67 : f32 to vector<8x32xf32>
    %192 = arith.addf %190, %191 : vector<8x32xf32>
    %193 = vector.extract_strided_slice %187 {offsets = [0, 32], sizes = [8, 32], strides = [1, 1]} : vector<8x128xf32> to vector<8x32xf32>
    %cst_68 = arith.constant 5.000000e-01 : f32
    %194 = vector.broadcast %cst_68 : f32 to vector<8x32xf32>
    %195 = arith.mulf %194, %193 : vector<8x32xf32>
    %cst_69 = arith.constant 5.000000e-01 : f32
    %196 = vector.broadcast %cst_69 : f32 to vector<8x32xf32>
    %197 = arith.addf %195, %196 : vector<8x32xf32>
    %198 = vector.extract_strided_slice %187 {offsets = [0, 64], sizes = [8, 32], strides = [1, 1]} : vector<8x128xf32> to vector<8x32xf32>
    %199 = vector.extract_strided_slice %187 {offsets = [0, 96], sizes = [8, 32], strides = [1, 1]} : vector<8x128xf32> to vector<8x32xf32>
    %cst_70 = arith.constant 5.000000e-01 : f32
    %200 = vector.broadcast %cst_70 : f32 to vector<8x32xf32>
    %201 = arith.mulf %200, %199 : vector<8x32xf32>
    %cst_71 = arith.constant 5.000000e-01 : f32
    %202 = vector.broadcast %cst_71 : f32 to vector<8x32xf32>
    %203 = arith.addf %201, %202 : vector<8x32xf32>
    %204 = arith.mulf %197, %173 : vector<8x32xf32>
    %205 = arith.mulf %192, %198 : vector<8x32xf32>
    %206 = arith.addf %204, %205 : vector<8x32xf32>
    %207 = math.tanh %206 : vector<8x32xf32>
    %208 = arith.mulf %203, %207 : vector<8x32xf32>
    %209 = arith.index_cast %c5_i32 : i32 to index
    %c0_72 = arith.constant 0 : index
    %c0_73 = arith.constant 0 : index
    %210 = vector.load %arg4[%209, %c0_72, %c0_73] : memref<8x8x32xf32, #tpu.memory_space<vmem>>, vector<1x8x32xf32>
    %211 = vector.shape_cast %210 : vector<1x8x32xf32> to vector<8x32xf32>
    %212 = vector.shape_cast %208 : vector<8x32xf32> to vector<1x8x32xf32>
    tpu.vector_store %arg4[%209, %c0_72, %c0_73], %212 {strides = array<i32>} : memref<8x8x32xf32, #tpu.memory_space<vmem>>, vector<1x8x32xf32>,
    %c6_i32 = arith.constant 6 : i32
    %213 = arith.index_cast %c6_i32 : i32 to index
    %c0_74 = arith.constant 0 : index
    %c0_75 = arith.constant 0 : index
    %214 = vector.load %arg2[%213, %c0_74, %c0_75] : memref<8x8x128xf32, #tpu.memory_space<vmem>>, vector<1x8x128xf32>
    %215 = vector.shape_cast %214 : vector<1x8x128xf32> to vector<8x128xf32>
    %216 = arith.truncf %208 : vector<8x32xf32> to vector<8x32xbf16>
    %cst_76 = arith.constant dense<0.000000e+00> : vector<8x128xf32>
    %217 = tpu.matmul %216, %3, %cst_76 {dimension_numbers = #tpu.dot_dimension_numbers<[1], [0], [0], [1], [0, 0, 1, 1], [], []>} : vector<8x32xbf16>, vector<32x128xbf16>, vector<8x128xf32> -> vector<8x128xf32>
    %218 = arith.addf %215, %217 : vector<8x128xf32>
    %219 = arith.mulf %218, %12 : vector<8x128xf32>
    %220 = math.tanh %219 : vector<8x128xf32>
    %221 = vector.extract_strided_slice %220 {offsets = [0, 0], sizes = [8, 32], strides = [1, 1]} : vector<8x128xf32> to vector<8x32xf32>
    %cst_77 = arith.constant 5.000000e-01 : f32
    %222 = vector.broadcast %cst_77 : f32 to vector<8x32xf32>
    %223 = arith.mulf %222, %221 : vector<8x32xf32>
    %cst_78 = arith.constant 5.000000e-01 : f32
    %224 = vector.broadcast %cst_78 : f32 to vector<8x32xf32>
    %225 = arith.addf %223, %224 : vector<8x32xf32>
    %226 = vector.extract_strided_slice %220 {offsets = [0, 32], sizes = [8, 32], strides = [1, 1]} : vector<8x128xf32> to vector<8x32xf32>
    %cst_79 = arith.constant 5.000000e-01 : f32
    %227 = vector.broadcast %cst_79 : f32 to vector<8x32xf32>
    %228 = arith.mulf %227, %226 : vector<8x32xf32>
    %cst_80 = arith.constant 5.000000e-01 : f32
    %229 = vector.broadcast %cst_80 : f32 to vector<8x32xf32>
    %230 = arith.addf %228, %229 : vector<8x32xf32>
    %231 = vector.extract_strided_slice %220 {offsets = [0, 64], sizes = [8, 32], strides = [1, 1]} : vector<8x128xf32> to vector<8x32xf32>
    %232 = vector.extract_strided_slice %220 {offsets = [0, 96], sizes = [8, 32], strides = [1, 1]} : vector<8x128xf32> to vector<8x32xf32>
    %cst_81 = arith.constant 5.000000e-01 : f32
    %233 = vector.broadcast %cst_81 : f32 to vector<8x32xf32>
    %234 = arith.mulf %233, %232 : vector<8x32xf32>
    %cst_82 = arith.constant 5.000000e-01 : f32
    %235 = vector.broadcast %cst_82 : f32 to vector<8x32xf32>
    %236 = arith.addf %234, %235 : vector<8x32xf32>
    %237 = arith.mulf %230, %206 : vector<8x32xf32>
    %238 = arith.mulf %225, %231 : vector<8x32xf32>
    %239 = arith.addf %237, %238 : vector<8x32xf32>
    %240 = math.tanh %239 : vector<8x32xf32>
    %241 = arith.mulf %236, %240 : vector<8x32xf32>
    %242 = arith.index_cast %c6_i32 : i32 to index
    %c0_83 = arith.constant 0 : index
    %c0_84 = arith.constant 0 : index
    %243 = vector.load %arg4[%242, %c0_83, %c0_84] : memref<8x8x32xf32, #tpu.memory_space<vmem>>, vector<1x8x32xf32>
    %244 = vector.shape_cast %243 : vector<1x8x32xf32> to vector<8x32xf32>
    %245 = vector.shape_cast %241 : vector<8x32xf32> to vector<1x8x32xf32>
    tpu.vector_store %arg4[%242, %c0_83, %c0_84], %245 {strides = array<i32>} : memref<8x8x32xf32, #tpu.memory_space<vmem>>, vector<1x8x32xf32>,
    %c7_i32 = arith.constant 7 : i32
    %246 = arith.index_cast %c7_i32 : i32 to index
    %c0_85 = arith.constant 0 : index
    %c0_86 = arith.constant 0 : index
    %247 = vector.load %arg2[%246, %c0_85, %c0_86] : memref<8x8x128xf32, #tpu.memory_space<vmem>>, vector<1x8x128xf32>
    %248 = vector.shape_cast %247 : vector<1x8x128xf32> to vector<8x128xf32>
    %249 = arith.truncf %241 : vector<8x32xf32> to vector<8x32xbf16>
    %cst_87 = arith.constant dense<0.000000e+00> : vector<8x128xf32>
    %250 = tpu.matmul %249, %3, %cst_87 {dimension_numbers = #tpu.dot_dimension_numbers<[1], [0], [0], [1], [0, 0, 1, 1], [], []>} : vector<8x32xbf16>, vector<32x128xbf16>, vector<8x128xf32> -> vector<8x128xf32>
    %251 = arith.addf %248, %250 : vector<8x128xf32>
    %252 = arith.mulf %251, %12 : vector<8x128xf32>
    %253 = math.tanh %252 : vector<8x128xf32>
    %254 = vector.extract_strided_slice %253 {offsets = [0, 0], sizes = [8, 32], strides = [1, 1]} : vector<8x128xf32> to vector<8x32xf32>
    %cst_88 = arith.constant 5.000000e-01 : f32
    %255 = vector.broadcast %cst_88 : f32 to vector<8x32xf32>
    %256 = arith.mulf %255, %254 : vector<8x32xf32>
    %cst_89 = arith.constant 5.000000e-01 : f32
    %257 = vector.broadcast %cst_89 : f32 to vector<8x32xf32>
    %258 = arith.addf %256, %257 : vector<8x32xf32>
    %259 = vector.extract_strided_slice %253 {offsets = [0, 32], sizes = [8, 32], strides = [1, 1]} : vector<8x128xf32> to vector<8x32xf32>
    %cst_90 = arith.constant 5.000000e-01 : f32
    %260 = vector.broadcast %cst_90 : f32 to vector<8x32xf32>
    %261 = arith.mulf %260, %259 : vector<8x32xf32>
    %cst_91 = arith.constant 5.000000e-01 : f32
    %262 = vector.broadcast %cst_91 : f32 to vector<8x32xf32>
    %263 = arith.addf %261, %262 : vector<8x32xf32>
    %264 = vector.extract_strided_slice %253 {offsets = [0, 64], sizes = [8, 32], strides = [1, 1]} : vector<8x128xf32> to vector<8x32xf32>
    %265 = vector.extract_strided_slice %253 {offsets = [0, 96], sizes = [8, 32], strides = [1, 1]} : vector<8x128xf32> to vector<8x32xf32>
    %cst_92 = arith.constant 5.000000e-01 : f32
    %266 = vector.broadcast %cst_92 : f32 to vector<8x32xf32>
    %267 = arith.mulf %266, %265 : vector<8x32xf32>
    %cst_93 = arith.constant 5.000000e-01 : f32
    %268 = vector.broadcast %cst_93 : f32 to vector<8x32xf32>
    %269 = arith.addf %267, %268 : vector<8x32xf32>
    %270 = arith.mulf %263, %239 : vector<8x32xf32>
    %271 = arith.mulf %258, %264 : vector<8x32xf32>
    %272 = arith.addf %270, %271 : vector<8x32xf32>
    %273 = math.tanh %272 : vector<8x32xf32>
    %274 = arith.mulf %269, %273 : vector<8x32xf32>
    %275 = arith.index_cast %c7_i32 : i32 to index
    %c0_94 = arith.constant 0 : index
    %c0_95 = arith.constant 0 : index
    %276 = vector.load %arg4[%275, %c0_94, %c0_95] : memref<8x8x32xf32, #tpu.memory_space<vmem>>, vector<1x8x32xf32>
    %277 = vector.shape_cast %276 : vector<1x8x32xf32> to vector<8x32xf32>
    %278 = vector.shape_cast %274 : vector<8x32xf32> to vector<1x8x32xf32>
    tpu.vector_store %arg4[%275, %c0_94, %c0_95], %278 {strides = array<i32>} : memref<8x8x32xf32, #tpu.memory_space<vmem>>, vector<1x8x32xf32>,
    %c8_i32 = arith.constant 8 : i32
    %c0_96 = arith.constant 0 : index
    %c0_97 = arith.constant 0 : index
    %279 = vector.load %arg5[%c0_96, %c0_97] : memref<8x32xf32, #tpu.memory_space<vmem>>, vector<8x32xf32>
    tpu.vector_store %arg5[%c0_96, %c0_97], %274 {strides = array<i32>} : memref<8x32xf32, #tpu.memory_space<vmem>>, vector<8x32xf32>,
    %c0_98 = arith.constant 0 : index
    %c0_99 = arith.constant 0 : index
    %280 = vector.load %arg6[%c0_98, %c0_99] : memref<8x32xf32, #tpu.memory_space<vmem>>, vector<8x32xf32>
    tpu.vector_store %arg6[%c0_98, %c0_99], %272 {strides = array<i32>} : memref<8x32xf32, #tpu.memory_space<vmem>>, vector<8x32xf32>,
    return
  }
  func.func @transform_0(%arg0: i32, %arg1: i32) -> (i32, i32, i32) {
    %c0_i32 = arith.constant 0 : i32
    %c0_i32_0 = arith.constant 0 : i32
    return %arg1, %arg0, %c0_i32 : i32, i32, i32
  }
  func.func @transform_1(%arg0: i32, %arg1: i32) -> (i32, i32) {
    %c0_i32 = arith.constant 0 : i32
    %c0_i32_0 = arith.constant 0 : i32
    %c0_i32_1 = arith.constant 0 : i32
    return %c0_i32, %c0_i32_0 : i32, i32
  }
  func.func @transform_2(%arg0: i32, %arg1: i32) -> (i32, i32, i32) {
    %c0_i32 = arith.constant 0 : i32
    %c0_i32_0 = arith.constant 0 : i32
    return %arg1, %arg0, %c0_i32 : i32, i32, i32
  }
}

</mosaic_0001>

<llo_original>
// kernel: tpu_custom_call.1
$region0: #{tpu_custom_call.1}
  #allocation0 [shape = 'u32[]', space=smem, size = 0x4, offset = 0x4, fixed_abs, tag = 'smem constant byte address 0x4 - core index']
  #allocation1 [shape = 'u32[72,128]{1,0:T(1,128)}', space=vmem, size = 0x9000, scoped, tag = 'internal scratch']
  #allocation2 [shape = 'f32[8,32]{1,0:T(8,128)}', space=vmem, size = 0x1000, scoped, tag = 'scratch operand']
  #allocation3 [shape = 'f32[8,32]{1,0:T(8,128)}', space=vmem, size = 0x1000, scoped, tag = 'scratch operand']
  %s0 = inlined_call_operand.hbm [shape: f32[8,8,128], index: 0, kind: input, shape index: {}]
  %s1 = inlined_call_operand.hbm [shape: bf16[32,128], index: 1, kind: input, shape index: {}]
  %s2 = inlined_call_operand.hbm [shape: f32[8,8,32], index: 2, kind: output, shape index: {}]
  %s3 = sld [smem:[#allocation0]]
  $region30: #{tpu_custom_call.1} parent=0
    _
  %s5 = ssub.s32 1, %s3
  %s6 = scalar_select 0, %s5, %s3
  $region1: #{tpu_custom_call.1} parent=0
    #allocation4 [shape = 'u8[32768]{0}', space=vmem, size = 0x8000, scoped, tag = 'input window, operand 0, single buffered']
    #allocation5 [shape = 's32[1]{0}', space=sflag, size = 0x4, scoped, tag = 'scoped memory for tpu_custom_call.1']
    #allocation6 [shape = 's32[1]{0}', space=sflag, size = 0x4, scoped, tag = 'scoped memory for tpu_custom_call.1']
    #allocation7 [shape = 'u8[8192]{0}', space=vmem, size = 0x2000, scoped, tag = 'input window, operand 1, single buffered']
    #allocation8 [shape = 's32[1]{0}', space=sflag, size = 0x4, scoped, tag = 'scoped memory for tpu_custom_call.1']
    #allocation9 [shape = 'u8[32768]{0}', space=vmem, size = 0x8000, scoped, tag = 'output window, operand 0, single buffered']
    %7 = vsyncpa [#allocation5], 0
    %8 = vsyncpa [#allocation8], 0
    %9 = vsyncpa [#allocation6], 0
    // Predicated region
    $region2: #{tpu_custom_call.1} parent=1 // pred_check
      _
    $region3: #{tpu_custom_call.1} parent=1 // pred_check_branch
      %11 = sbr.rel (0) target = $region5
    $region4: #{tpu_custom_call.1} parent=1 // pred_region
      %13 = vsyncadd [#allocation5], 0
      %s14 = sshll.u32 %s0, 4
      %s15 = int_to_ptr.hbm [resolvable:$true] %s14
      %s16 = sshll.u32 [#allocation4], 4
      %s17 = int_to_ptr.vmem [resolvable:$true] %s16
      %22 = dma.hbm_to_vmem [thread:$0]  %s15, 1024, %s17, [#allocation5], 128, 128, 8
    $region5: #{tpu_custom_call.1} parent=1 // pred_fallthru
      _
    // Predicated region
    $region6: #{tpu_custom_call.1} parent=1 // pred_check
      _
    $region7: #{tpu_custom_call.1} parent=1 // pred_check_branch
      %24 = sbr.rel (0) target = $region9
    $region8: #{tpu_custom_call.1} parent=1 // pred_region
      %26 = vsyncadd [#allocation8], 0
      %s27 = sshll.u32 %s1, 4
      %s28 = int_to_ptr.hbm [resolvable:$true] %s27
      %s29 = sshll.u32 [#allocation7], 4
      %s30 = int_to_ptr.vmem [resolvable:$true] %s29
      %35 = dma.hbm_to_vmem [thread:$0]  %s28, 256, %s30, [#allocation8], 64, 64, 4
    $region9: #{tpu_custom_call.1} parent=1 // pred_fallthru
      _
    // Predicated region
    $region10: #{tpu_custom_call.1} parent=1 // pred_check
      _
    $region11: #{tpu_custom_call.1} parent=1 // pred_check_branch
      %37 = sbr.rel (0) target = $region13
    $region12: #{tpu_custom_call.1} parent=1 // pred_region
      %39 = dma.done [#allocation5], 1024
    $region13: #{tpu_custom_call.1} parent=1 // pred_fallthru
      _
    // Predicated region
    $region14: #{tpu_custom_call.1} parent=1 // pred_check
      _
    $region15: #{tpu_custom_call.1} parent=1 // pred_check_branch
      %41 = sbr.rel (0) target = $region17
    $region16: #{tpu_custom_call.1} parent=1 // pred_region
      %43 = dma.done [#allocation8], 256
    $region17: #{tpu_custom_call.1} parent=1 // pred_fallthru
      _
    %p45 = scmp.eq.s32.totalorder 0, 0
    // Predicated region
    $region18: #{tpu_custom_call.1} parent=1 // pred_check
      %p46 = pneg %p45
    $region19: #{tpu_custom_call.1} parent=1 // pred_check_branch
      %48 = sbr.rel (%p46) target = $region21
    $region20: #{tpu_custom_call.1} parent=1 // pred_region
      %vm49 = vcmask 261120
      %50 = vst.msk [vmem:[#allocation2] sm:$0xff] %vm49, 0.0
      %51 = vst.msk [vmem:[#allocation3] sm:$0xff] %vm49, 0.0
    $region21: #{tpu_custom_call.1} parent=1 // pred_fallthru
      _
    %v52 = vld [vmem:[#allocation7] sm:$0xf]
    %v53 = vld [vmem:[#allocation7 + $0x4] sm:$0xf]
    %v54 = vld [vmem:[#allocation7 + $0x8] sm:$0xf]
    %v55 = vld [vmem:[#allocation7 + $0xc] sm:$0xf]
    %v56 = vlaneseq
    %v57 = vand.u32 %v56, 127
    %vm58 = vcmp.ge.s32.totalorder %v57, 64
    %vm59 = vcmp.lt.s32.totalorder %v57, 96
    %vm60 = vmand %vm58, %vm59
    %v61 = vsel %vm60, 1.0, 0.5
    %v62 = vld [vmem:[#allocation2] sm:$0xff]
    %v63 = vld [vmem:[#allocation3] sm:$0xff]
    %v64 = vld [vmem:[#allocation4] sm:$0xff]
    %v65 = vpack.c.bf16 %v62, %v62
    %v70 = vunpack.c.l.b16 %v52
    %v71 = vunpack.c.l.b16 %v53
    %v72 = vunpack.c.l.b16 %v54
    %v73 = vunpack.c.l.b16 %v55
    %v74 = vpack.c.b16 %v71, %v70
    %v75 = vpack.c.b16 %v73, %v72
    %vm78 = vcmask 261120
    %v80 = vsel %vm78, %v65, 0
    %82 = vmatpush.bf16.msra.mxu0 0
    %83 = vmatpush.bf16.msra.mxu0 0
    %84 = vmatpush.bf16.msra.mxu0 0
    %85 = vmatpush.bf16.msra.mxu0 0
    %86 = vmatpush.bf16.msra.mxu0 0
    %87 = vmatpush.bf16.msra.mxu0 0
    %88 = vmatpush.bf16.msra.mxu0 %v75
    %89 = vmatpush.bf16.msra.mxu0 %v74
    %90 = vmatmul.bf16.gmra.mxu0 %v80
    %v91 = vpop.f32.mrf.mxu0
    %v92 = vadd.f32 0.0, %v91
    %v93 = vpop.f32.mrf.mxu0
    %94 = vdwg.mxu0
    %v95 = vadd.f32 %v64, %v92
    %v96 = vmul.f32 %v95, %v61
    %v97 = vtanh.pop %v96
    %v98 = vmul.f32 %v97, 0.5
    %v99 = vadd.f32 %v98, 0.5
    %101 = vrot.lane.b32.xlu0 %v63, 32
    %v102 = vpop.permute.xlu0 %101
    %v104 = vmul.f32 %v99, %v102
    %106 = vrot.lane.b32.xlu0 %v97, 64
    %v107 = vpop.permute.xlu0 %106
    %v109 = vmul.f32 %v99, %v107
    %111 = vrot.lane.b32.xlu0 %v109, 32
    %v112 = vpop.permute.xlu0 %111
    %v114 = vadd.f32 %v104, %v112
    %v115 = vtanh.pop %v114
    %117 = vrot.lane.b32.xlu0 %v115, 64
    %v118 = vpop.permute.xlu0 %117
    %v120 = vmul.f32 %v99, %v118
    %122 = vrot.lane.b32.xlu0 %v120, 32
    %v123 = vpop.permute.xlu0 %122
    %125 = vst.msk [vmem:[#allocation9] sm:$0xff] %vm78, %v123
    %s126 = scalar_lea.vmem [#allocation4], 8
    %v127 = vld [vmem:[%s126] sm:$0xff]
    %v128 = vpack.c.bf16 %v120, %v120
    %130 = vrot.lane.b32.xlu0 %v128, 32
    %v131 = vpop.permute.xlu0 %130
    %v133 = vsel %vm78, %v131, 0
    %135 = vmatpush.bf16.msra.mxu0 0
    %136 = vmatpush.bf16.msra.mxu0 0
    %137 = vmatpush.bf16.msra.mxu0 0
    %138 = vmatpush.bf16.msra.mxu0 0
    %139 = vmatpush.bf16.msra.mxu0 0
    %140 = vmatpush.bf16.msra.mxu0 0
    %141 = vmatpush.bf16.msra.mxu0 %v75
    %142 = vmatpush.bf16.msra.mxu0 %v74
    %143 = vmatmul.bf16.gmra.mxu0 %v133
    %v144 = vpop.f32.mrf.mxu0
    %v145 = vadd.f32 0.0, %v144
    %v146 = vpop.f32.mrf.mxu0
    %147 = vdwg.mxu0
    %v148 = vadd.f32 %v127, %v145
    %v149 = vmul.f32 %v148, %v61
    %v150 = vtanh.pop %v149
    %v151 = vmul.f32 %v150, 0.5
    %v152 = vadd.f32 %v151, 0.5
    %v153 = vmul.f32 %v152, %v114
    %155 = vrot.lane.b32.xlu0 %v150, 64
    %v156 = vpop.permute.xlu0 %155
    %v158 = vmul.f32 %v152, %v156
    %160 = vrot.lane.b32.xlu0 %v158, 32
    %v161 = vpop.permute.xlu0 %160
    %v163 = vadd.f32 %v153, %v161
    %v164 = vtanh.pop %v163
    %166 = vrot.lane.b32.xlu0 %v164, 64
    %v167 = vpop.permute.xlu0 %166
    %v169 = vmul.f32 %v152, %v167
    %171 = vrot.lane.b32.xlu0 %v169, 32
    %v172 = vpop.permute.xlu0 %171
    %s174 = scalar_lea.vmem [#allocation9], 8
    %175 = vst.msk [vmem:[%s174] sm:$0xff] %vm78, %v172
    %s176 = scalar_lea.vmem [#allocation4], 16
    %v177 = vld [vmem:[%s176] sm:$0xff]
    %v178 = vpack.c.bf16 %v169, %v169
    %180 = vrot.lane.b32.xlu0 %v178, 32
    %v181 = vpop.permute.xlu0 %180
    %v183 = vsel %vm78, %v181, 0
    %185 = vmatpush.bf16.msra.mxu0 0
    %186 = vmatpush.bf16.msra.mxu0 0
    %187 = vmatpush.bf16.msra.mxu0 0
    %188 = vmatpush.bf16.msra.mxu0 0
    %189 = vmatpush.bf16.msra.mxu0 0
    %190 = vmatpush.bf16.msra.mxu0 0
    %191 = vmatpush.bf16.msra.mxu0 %v75
    %192 = vmatpush.bf16.msra.mxu0 %v74
    %193 = vmatmul.bf16.gmra.mxu0 %v183
    %v194 = vpop.f32.mrf.mxu0
    %v195 = vadd.f32 0.0, %v194
    %v196 = vpop.f32.mrf.mxu0
    %197 = vdwg.mxu0
    %v198 = vadd.f32 %v177, %v195
    %v199 = vmul.f32 %v198, %v61
    %v200 = vtanh.pop %v199
    %v201 = vmul.f32 %v200, 0.5
    %v202 = vadd.f32 %v201, 0.5
    %v203 = vmul.f32 %v202, %v163
    %205 = vrot.lane.b32.xlu0 %v200, 64
    %v206 = vpop.permute.xlu0 %205
    %v208 = vmul.f32 %v202, %v206
    %210 = vrot.lane.b32.xlu0 %v208, 32
    %v211 = vpop.permute.xlu0 %210
    %v213 = vadd.f32 %v203, %v211
    %v214 = vtanh.pop %v213
    %216 = vrot.lane.b32.xlu0 %v214, 64
    %v217 = vpop.permute.xlu0 %216
    %v219 = vmul.f32 %v202, %v217
    %221 = vrot.lane.b32.xlu0 %v219, 32
    %v222 = vpop.permute.xlu0 %221
    %s224 = scalar_lea.vmem [#allocation9], 16
    %225 = vst.msk [vmem:[%s224] sm:$0xff] %vm78, %v222
    %s226 = scalar_lea.vmem [#allocation4], 24
    %v227 = vld [vmem:[%s226] sm:$0xff]
    %v228 = vpack.c.bf16 %v219, %v219
    %230 = vrot.lane.b32.xlu0 %v228, 32
    %v231 = vpop.permute.xlu0 %230
    %v233 = vsel %vm78, %v231, 0
    %235 = vmatpush.bf16.msra.mxu0 0
    %236 = vmatpush.bf16.msra.mxu0 0
    %237 = vmatpush.bf16.msra.mxu0 0
    %238 = vmatpush.bf16.msra.mxu0 0
    %239 = vmatpush.bf16.msra.mxu0 0
    %240 = vmatpush.bf16.msra.mxu0 0
    %241 = vmatpush.bf16.msra.mxu0 %v75
    %242 = vmatpush.bf16.msra.mxu0 %v74
    %243 = vmatmul.bf16.gmra.mxu0 %v233
    %v244 = vpop.f32.mrf.mxu0
    %v245 = vadd.f32 0.0, %v244
    %v246 = vpop.f32.mrf.mxu0
    %247 = vdwg.mxu0
    %v248 = vadd.f32 %v227, %v245
    %v249 = vmul.f32 %v248, %v61
    %v250 = vtanh.pop %v249
    %v251 = vmul.f32 %v250, 0.5
    %v252 = vadd.f32 %v251, 0.5
    %v253 = vmul.f32 %v252, %v213
    %255 = vrot.lane.b32.xlu0 %v250, 64
    %v256 = vpop.permute.xlu0 %255
    %v258 = vmul.f32 %v252, %v256
    %260 = vrot.lane.b32.xlu0 %v258, 32
    %v261 = vpop.permute.xlu0 %260
    %v263 = vadd.f32 %v253, %v261
    %v264 = vtanh.pop %v263
    %266 = vrot.lane.b32.xlu0 %v264, 64
    %v267 = vpop.permute.xlu0 %266
    %v269 = vmul.f32 %v252, %v267
    %271 = vrot.lane.b32.xlu0 %v269, 32
    %v272 = vpop.permute.xlu0 %271
    %s274 = scalar_lea.vmem [#allocation9], 24
    %275 = vst.msk [vmem:[%s274] sm:$0xff] %vm78, %v272
    %s276 = scalar_lea.vmem [#allocation4], 32
    %v277 = vld [vmem:[%s276] sm:$0xff]
    %v278 = vpack.c.bf16 %v269, %v269
    %280 = vrot.lane.b32.xlu0 %v278, 32
    %v281 = vpop.permute.xlu0 %280
    %v283 = vsel %vm78, %v281, 0
    %285 = vmatpush.bf16.msra.mxu0 0
    %286 = vmatpush.bf16.msra.mxu0 0
    %287 = vmatpush.bf16.msra.mxu0 0
    %288 = vmatpush.bf16.msra.mxu0 0
    %289 = vmatpush.bf16.msra.mxu0 0
    %290 = vmatpush.bf16.msra.mxu0 0
    %291 = vmatpush.bf16.msra.mxu0 %v75
    %292 = vmatpush.bf16.msra.mxu0 %v74
    %293 = vmatmul.bf16.gmra.mxu0 %v283
    %v294 = vpop.f32.mrf.mxu0
    %v295 = vadd.f32 0.0, %v294
    %v296 = vpop.f32.mrf.mxu0
    %297 = vdwg.mxu0
    %v298 = vadd.f32 %v277, %v295
    %v299 = vmul.f32 %v298, %v61
    %v300 = vtanh.pop %v299
    %v301 = vmul.f32 %v300, 0.5
    %v302 = vadd.f32 %v301, 0.5
    %v303 = vmul.f32 %v302, %v263
    %305 = vrot.lane.b32.xlu0 %v300, 64
    %v306 = vpop.permute.xlu0 %305
    %v308 = vmul.f32 %v302, %v306
    %310 = vrot.lane.b32.xlu0 %v308, 32
    %v311 = vpop.permute.xlu0 %310
    %v313 = vadd.f32 %v303, %v311
    %v314 = vtanh.pop %v313
    %316 = vrot.lane.b32.xlu0 %v314, 64
    %v317 = vpop.permute.xlu0 %316
    %v319 = vmul.f32 %v302, %v317
    %321 = vrot.lane.b32.xlu0 %v319, 32
    %v322 = vpop.permute.xlu0 %321
    %s324 = scalar_lea.vmem [#allocation9], 32
    %325 = vst.msk [vmem:[%s324] sm:$0xff] %vm78, %v322
    %s326 = scalar_lea.vmem [#allocation4], 40
    %v327 = vld [vmem:[%s326] sm:$0xff]
    %v328 = vpack.c.bf16 %v319, %v319
    %330 = vrot.lane.b32.xlu0 %v328, 32
    %v331 = vpop.permute.xlu0 %330
    %v333 = vsel %vm78, %v331, 0
    %335 = vmatpush.bf16.msra.mxu0 0
    %336 = vmatpush.bf16.msra.mxu0 0
    %337 = vmatpush.bf16.msra.mxu0 0
    %338 = vmatpush.bf16.msra.mxu0 0
    %339 = vmatpush.bf16.msra.mxu0 0
    %340 = vmatpush.bf16.msra.mxu0 0
    %341 = vmatpush.bf16.msra.mxu0 %v75
    %342 = vmatpush.bf16.msra.mxu0 %v74
    %343 = vmatmul.bf16.gmra.mxu0 %v333
    %v344 = vpop.f32.mrf.mxu0
    %v345 = vadd.f32 0.0, %v344
    %v346 = vpop.f32.mrf.mxu0
    %347 = vdwg.mxu0
    %v348 = vadd.f32 %v327, %v345
    %v349 = vmul.f32 %v348, %v61
    %v350 = vtanh.pop %v349
    %v351 = vmul.f32 %v350, 0.5
    %v352 = vadd.f32 %v351, 0.5
    %v353 = vmul.f32 %v352, %v313
    %355 = vrot.lane.b32.xlu0 %v350, 64
    %v356 = vpop.permute.xlu0 %355
    %v358 = vmul.f32 %v352, %v356
    %360 = vrot.lane.b32.xlu0 %v358, 32
    %v361 = vpop.permute.xlu0 %360
    %v363 = vadd.f32 %v353, %v361
    %v364 = vtanh.pop %v363
    %366 = vrot.lane.b32.xlu0 %v364, 64
    %v367 = vpop.permute.xlu0 %366
    %v369 = vmul.f32 %v352, %v367
    %371 = vrot.lane.b32.xlu0 %v369, 32
    %v372 = vpop.permute.xlu0 %371
    %s374 = scalar_lea.vmem [#allocation9], 40
    %375 = vst.msk [vmem:[%s374] sm:$0xff] %vm78, %v372
    %s376 = scalar_lea.vmem [#allocation4], 48
    %v377 = vld [vmem:[%s376] sm:$0xff]
    %v378 = vpack.c.bf16 %v369, %v369
    %380 = vrot.lane.b32.xlu0 %v378, 32
    %v381 = vpop.permute.xlu0 %380
    %v383 = vsel %vm78, %v381, 0
    %385 = vmatpush.bf16.msra.mxu0 0
    %386 = vmatpush.bf16.msra.mxu0 0
    %387 = vmatpush.bf16.msra.mxu0 0
    %388 = vmatpush.bf16.msra.mxu0 0
    %389 = vmatpush.bf16.msra.mxu0 0
    %390 = vmatpush.bf16.msra.mxu0 0
    %391 = vmatpush.bf16.msra.mxu0 %v75
    %392 = vmatpush.bf16.msra.mxu0 %v74
    %393 = vmatmul.bf16.gmra.mxu0 %v383
    %v394 = vpop.f32.mrf.mxu0
    %v395 = vadd.f32 0.0, %v394
    %v396 = vpop.f32.mrf.mxu0
    %397 = vdwg.mxu0
    %v398 = vadd.f32 %v377, %v395
    %v399 = vmul.f32 %v398, %v61
    %v400 = vtanh.pop %v399
    %v401 = vmul.f32 %v400, 0.5
    %v402 = vadd.f32 %v401, 0.5
    %v403 = vmul.f32 %v402, %v363
    %405 = vrot.lane.b32.xlu0 %v400, 64
    %v406 = vpop.permute.xlu0 %405
    %v408 = vmul.f32 %v402, %v406
    %410 = vrot.lane.b32.xlu0 %v408, 32
    %v411 = vpop.permute.xlu0 %410
    %v413 = vadd.f32 %v403, %v411
    %v414 = vtanh.pop %v413
    %416 = vrot.lane.b32.xlu0 %v414, 64
    %v417 = vpop.permute.xlu0 %416
    %v419 = vmul.f32 %v402, %v417
    %421 = vrot.lane.b32.xlu0 %v419, 32
    %v422 = vpop.permute.xlu0 %421
    %s424 = scalar_lea.vmem [#allocation9], 48
    %425 = vst.msk [vmem:[%s424] sm:$0xff] %vm78, %v422
    %s426 = scalar_lea.vmem [#allocation4], 56
    %v427 = vld [vmem:[%s426] sm:$0xff]
    %v428 = vpack.c.bf16 %v419, %v419
    %430 = vrot.lane.b32.xlu0 %v428, 32
    %v431 = vpop.permute.xlu0 %430
    %v433 = vsel %vm78, %v431, 0
    %435 = vmatpush.bf16.msra.mxu0 0
    %436 = vmatpush.bf16.msra.mxu0 0
    %437 = vmatpush.bf16.msra.mxu0 0
    %438 = vmatpush.bf16.msra.mxu0 0
    %439 = vmatpush.bf16.msra.mxu0 0
    %440 = vmatpush.bf16.msra.mxu0 0
    %441 = vmatpush.bf16.msra.mxu0 %v75
    %442 = vmatpush.bf16.msra.mxu0 %v74
    %443 = vmatmul.bf16.gmra.mxu0 %v433
    %v444 = vpop.f32.mrf.mxu0
    %v445 = vadd.f32 0.0, %v444
    %v446 = vpop.f32.mrf.mxu0
    %447 = vdwg.mxu0
    %v448 = vadd.f32 %v427, %v445
    %v449 = vmul.f32 %v448, %v61
    %v450 = vtanh.pop %v449
    %v451 = vmul.f32 %v450, 0.5
    %v452 = vadd.f32 %v451, 0.5
    %v453 = vmul.f32 %v452, %v413
    %455 = vrot.lane.b32.xlu0 %v450, 64
    %v456 = vpop.permute.xlu0 %455
    %v458 = vmul.f32 %v452, %v456
    %460 = vrot.lane.b32.xlu0 %v458, 32
    %v461 = vpop.permute.xlu0 %460
    %v463 = vadd.f32 %v453, %v461
    %v464 = vtanh.pop %v463
    %466 = vrot.lane.b32.xlu0 %v464, 64
    %v467 = vpop.permute.xlu0 %466
    %v469 = vmul.f32 %v452, %v467
    %471 = vrot.lane.b32.xlu0 %v469, 32
    %v472 = vpop.permute.xlu0 %471
    %s474 = scalar_lea.vmem [#allocation9], 56
    %475 = vst.msk [vmem:[%s474] sm:$0xff] %vm78, %v472
    %476 = vst.msk [vmem:[#allocation2] sm:$0xff] %vm78, %v472
    %478 = vrot.lane.b32.xlu0 %v463, 96
    %v479 = vpop.permute.xlu0 %478
    %481 = vst.msk [vmem:[#allocation3] sm:$0xff] %vm78, %v479
    // Predicated region
    $region22: #{tpu_custom_call.1} parent=1 // pred_check
      _
    $region23: #{tpu_custom_call.1} parent=1 // pred_check_branch
      %483 = sbr.rel (0) target = $region25
    $region24: #{tpu_custom_call.1} parent=1 // pred_region
      %485 = vsyncadd [#allocation6], 0
      %s486 = sshll.u32 [#allocation9], 4
      %s487 = int_to_ptr.vmem [resolvable:$true] %s486
      %s488 = sshll.u32 %s2, 4
      %s489 = int_to_ptr.hbm [resolvable:$true] %s488
      %494 = dma.vmem_to_hbm [thread:$0]  %s487, 1024, %s489, [#allocation6], 128, 128, 8
    $region25: #{tpu_custom_call.1} parent=1 // pred_fallthru
      _
    // Predicated region
    $region26: #{tpu_custom_call.1} parent=1 // pred_check
      _
    $region27: #{tpu_custom_call.1} parent=1 // pred_check_branch
      %496 = sbr.rel (0) target = $region29
    $region28: #{tpu_custom_call.1} parent=1 // pred_region
      %498 = dma.done [#allocation6], 1024
    $region29: #{tpu_custom_call.1} parent=1 // pred_fallthru
      _
    %499 = vsyncpa [#allocation5], 1
    %500 = vsyncpa [#allocation8], 1
    %501 = vsyncpa [#allocation6], 1

</llo_original>
